<compile_context>
chip_gen: v6e
topology: v6e:2x2x1
jax: 0.10.0
libtpu: 0.0.40
codegen_flags: <defaults>
</compile_context>

<pallas_src>
import jax
import jax.numpy as jnp
from jax.experimental import pallas as pl
from jax.experimental.pallas import tpu as pltpu

IN_FEATURES = 13
HIDDEN = 512
OUT_FEATURES = 2


def _round_up(n, m):
    return ((n + m - 1) // m) * m


def _mlp_kernel(x_ref, w1_ref, b1_ref, w2_ref, b2_ref, o_ref):
    # Layer 1: [TB,13] @ [13,512] on the MXU, bf16 inputs, f32 accumulation.
    x = x_ref[...].astype(jnp.bfloat16)
    h = jnp.dot(x, w1_ref[...], preferred_element_type=jnp.float32)
    # Bias + ReLU in f32 (implicit [1,512] broadcast; VPU work hidden under
    # the MXU / x-stream DMA).
    h = jnp.maximum(h + b1_ref[...], 0.0)
    # Layer 2: [TB,512] @ [512,2] on the MXU (keep it there; a 512-wide
    # cross-lane VPU/XLU reduction would only add bundles).
    y = jnp.dot(h.astype(jnp.bfloat16), w2_ref[...],
                preferred_element_type=jnp.float32)
    o_ref[...] = (y + b2_ref[...]).astype(o_ref.dtype)


def mlp_forward(x, w1, b1, w2, b2, *, block_b=2048):
    """x: [B, 13] f32; w1: [13, 512]; b1: [512]; w2: [512, 2]; b2: [2]."""
    B = x.shape[0]

    # Batch tile: multiple of 8 sublanes, capped at block_b (v7x-safe).
    tb = min(block_b, _round_up(B, 8))
    padded_b = _round_up(B, tb)
    if padded_b != B:
        x = jnp.pad(x, ((0, padded_b - B), (0, 0)))
    n_blocks = padded_b // tb

    # Weights cast once to bf16 (tiny, DMA'd a single time thanks to the
    # constant index_maps below). Biases stay f32, reshaped to 2-D.
    w1_bf = w1.astype(jnp.bfloat16)
    w2_bf = w2.astype(jnp.bfloat16)
    b1_2d = b1.reshape(1, HIDDEN).astype(jnp.float32)
    b2_2d = b2.reshape(1, OUT_FEATURES).astype(jnp.float32)

    out = pl.pallas_call(
        _mlp_kernel,
        out_shape=jax.ShapeDtypeStruct((padded_b, OUT_FEATURES), x.dtype),
        grid=(n_blocks,),
        in_specs=[
            # x: pipelined over the batch grid.
            pl.BlockSpec((tb, IN_FEATURES), lambda i: (i, 0)),
            # Parameters: constant block index -> VMEM-resident, DMA'd once.
            pl.BlockSpec((IN_FEATURES, HIDDEN), lambda i: (0, 0)),
            pl.BlockSpec((1, HIDDEN), lambda i: (0, 0)),
            pl.BlockSpec((HIDDEN, OUT_FEATURES), lambda i: (0, 0)),
            pl.BlockSpec((1, OUT_FEATURES), lambda i: (0, 0)),
        ],
        out_specs=pl.BlockSpec((tb, OUT_FEATURES), lambda i: (i, 0)),
        compiler_params=pltpu.CompilerParams(
            dimension_semantics=("parallel",)),
    )(x, w1_bf, b1_2d, w2_bf, b2_2d)

    return out[:B] if padded_b != B else out


def init_params(key):
    """Deterministic init mimicking nn.Linear's shapes (Kaiming-uniform-ish)."""
    k1, k2, k3, k4 = jax.random.split(key, 4)
    lim1 = 1.0 / (IN_FEATURES ** 0.5)
    lim2 = 1.0 / (HIDDEN ** 0.5)
    # Stored pre-transposed as (in, out) for the kernel.
    w1 = jax.random.uniform(k1, (IN_FEATURES, HIDDEN), jnp.float32, -lim1, lim1)
    b1 = jax.random.uniform(k2, (HIDDEN,), jnp.float32, -lim1, lim1)
    w2 = jax.random.uniform(k3, (HIDDEN, OUT_FEATURES), jnp.float32, -lim2, lim2)
    b2 = jax.random.uniform(k4, (OUT_FEATURES,), jnp.float32, -lim2, lim2)
    return w1, b1, w2, b2


if __name__ == "__main__":
    key = jax.random.PRNGKey(0)
    kx, kp = jax.random.split(key)

    batch = 8
    x = jax.random.normal(kx, (batch, IN_FEATURES), jnp.float32)
    w1, b1, w2, b2 = init_params(kp)

    out = mlp_forward(x, w1, b1, w2, b2)
    out = jax.block_until_ready(out)

    # Reference check against plain f32 JAX (loose tolerance: kernel matmuls
    # use bf16 inputs with f32 accumulation).
    ref = jnp.maximum(x @ w1 + b1, 0.0) @ w2 + b2
    assert out.shape == (batch, OUT_FEATURES)
    assert jnp.allclose(out, ref, atol=3e-2, rtol=3e-2), (
        f"max abs err {jnp.max(jnp.abs(out - ref))}")

    print("KERNEL_OK")
</pallas_src>

<mosaic_0001>
module attributes {stable_mosaic.version = 11 : i64} {
  func.func @_mlp_kernel(%arg0: i32, %arg1: memref<8x13xf32, #tpu.memory_space<vmem>>, %arg2: memref<13x512xbf16, #tpu.memory_space<vmem>>, %arg3: memref<1x512xf32, #tpu.memory_space<vmem>>, %arg4: memref<512x2xbf16, #tpu.memory_space<vmem>>, %arg5: memref<1x2xf32, #tpu.memory_space<vmem>>, %arg6: memref<8x2xf32, #tpu.memory_space<vmem>>) attributes {dimension_semantics = [#tpu.dimension_semantics<parallel>], iteration_bounds = array<i64: 1>, scalar_prefetch = 0 : i64, scratch_operands = 0 : i64, tpu.core_type = #tpu.core_type<tc>, window_params = [{transform_indices = @transform_0, window_bounds = array<i64: 8, 13>}, {pipeline_mode = #tpu.pipeline_mode<synchronous>, transform_indices = @transform_1, window_bounds = array<i64: 13, 512>}, {pipeline_mode = #tpu.pipeline_mode<synchronous>, transform_indices = @transform_2, window_bounds = array<i64: 1, 512>}, {pipeline_mode = #tpu.pipeline_mode<synchronous>, transform_indices = @transform_3, window_bounds = array<i64: 512, 2>}, {pipeline_mode = #tpu.pipeline_mode<synchronous>, transform_indices = @transform_4, window_bounds = array<i64: 1, 2>}, {transform_indices = @transform_5, window_bounds = array<i64: 8, 2>}]} {
    %c0 = arith.constant 0 : index
    %c0_0 = arith.constant 0 : index
    %0 = vector.load %arg1[%c0, %c0_0] : memref<8x13xf32, #tpu.memory_space<vmem>>, vector<8x13xf32>
    %1 = arith.truncf %0 : vector<8x13xf32> to vector<8x13xbf16>
    %c0_1 = arith.constant 0 : index
    %c0_2 = arith.constant 0 : index
    %2 = vector.load %arg2[%c0_1, %c0_2] : memref<13x512xbf16, #tpu.memory_space<vmem>>, vector<13x512xbf16>
    %cst = arith.constant dense<0.000000e+00> : vector<8x512xf32>
    %3 = tpu.matmul %1, %2, %cst {dimension_numbers = #tpu.dot_dimension_numbers<[1], [0], [0], [1], [0, 0, 1, 1], [], []>} : vector<8x13xbf16>, vector<13x512xbf16>, vector<8x512xf32> -> vector<8x512xf32>
    %c0_3 = arith.constant 0 : index
    %c0_4 = arith.constant 0 : index
    %4 = vector.load %arg3[%c0_3, %c0_4] : memref<1x512xf32, #tpu.memory_space<vmem>>, vector<1x512xf32>
    %5 = vector.broadcast %4 : vector<1x512xf32> to vector<8x512xf32>
    %6 = arith.addf %3, %5 : vector<8x512xf32>
    %cst_5 = arith.constant 0.000000e+00 : f32
    %7 = vector.broadcast %cst_5 : f32 to vector<8x512xf32>
    %8 = arith.maximumf %6, %7 : vector<8x512xf32>
    %9 = arith.truncf %8 : vector<8x512xf32> to vector<8x512xbf16>
    %c0_6 = arith.constant 0 : index
    %c0_7 = arith.constant 0 : index
    %10 = vector.load %arg4[%c0_6, %c0_7] : memref<512x2xbf16, #tpu.memory_space<vmem>>, vector<512x2xbf16>
    %cst_8 = arith.constant dense<0.000000e+00> : vector<8x2xf32>
    %11 = tpu.matmul %9, %10, %cst_8 {dimension_numbers = #tpu.dot_dimension_numbers<[1], [0], [0], [1], [0, 0, 1, 1], [], []>} : vector<8x512xbf16>, vector<512x2xbf16>, vector<8x2xf32> -> vector<8x2xf32>
    %c0_9 = arith.constant 0 : index
    %c0_10 = arith.constant 0 : index
    %12 = vector.load %arg5[%c0_9, %c0_10] : memref<1x2xf32, #tpu.memory_space<vmem>>, vector<1x2xf32>
    %13 = vector.broadcast %12 : vector<1x2xf32> to vector<8x2xf32>
    %14 = arith.addf %11, %13 : vector<8x2xf32>
    %c0_11 = arith.constant 0 : index
    %c0_12 = arith.constant 0 : index
    %15 = vector.load %arg6[%c0_11, %c0_12] : memref<8x2xf32, #tpu.memory_space<vmem>>, vector<8x2xf32>
    tpu.vector_store %arg6[%c0_11, %c0_12], %14 {strides = array<i32>} : memref<8x2xf32, #tpu.memory_space<vmem>>, vector<8x2xf32>,
    return
  }
  func.func @transform_0(%arg0: i32) -> (i32, i32) {
    %c0_i32 = arith.constant 0 : i32
    %c0_i32_0 = arith.constant 0 : i32
    return %arg0, %c0_i32 : i32, i32
  }
  func.func @transform_1(%arg0: i32) -> (i32, i32) {
    %c0_i32 = arith.constant 0 : i32
    %c0_i32_0 = arith.constant 0 : i32
    %c0_i32_1 = arith.constant 0 : i32
    return %c0_i32, %c0_i32_0 : i32, i32
  }
  func.func @transform_2(%arg0: i32) -> (i32, i32) {
    %c0_i32 = arith.constant 0 : i32
    %c0_i32_0 = arith.constant 0 : i32
    %c0_i32_1 = arith.constant 0 : i32
    return %c0_i32, %c0_i32_0 : i32, i32
  }
  func.func @transform_3(%arg0: i32) -> (i32, i32) {
    %c0_i32 = arith.constant 0 : i32
    %c0_i32_0 = arith.constant 0 : i32
    %c0_i32_1 = arith.constant 0 : i32
    return %c0_i32, %c0_i32_0 : i32, i32
  }
  func.func @transform_4(%arg0: i32) -> (i32, i32) {
    %c0_i32 = arith.constant 0 : i32
    %c0_i32_0 = arith.constant 0 : i32
    %c0_i32_1 = arith.constant 0 : i32
    return %c0_i32, %c0_i32_0 : i32, i32
  }
  func.func @transform_5(%arg0: i32) -> (i32, i32) {
    %c0_i32 = arith.constant 0 : i32
    %c0_i32_0 = arith.constant 0 : i32
    return %arg0, %c0_i32 : i32, i32
  }
}

</mosaic_0001>

<llo_original>
// kernel: tpu_custom_call.1
$region0: #{tpu_custom_call.1}
  #allocation0 [shape = 'u32[]', space=smem, size = 0x4, offset = 0x4, fixed_abs, tag = 'smem constant byte address 0x4 - core index']
  #allocation1 [shape = 'u32[144,128]{1,0:T(1,128)}', space=vmem, size = 0x12000, scoped, tag = 'internal scratch']
  %s0 = inlined_call_operand.vmem [shape: f32[8,13], index: 0, kind: input, shape index: {}]
  %s1 = inlined_call_operand.vmem [shape: bf16[13,512], index: 1, kind: input, shape index: {}]
  %s2 = inlined_call_operand.vmem [shape: f32[1,512], index: 2, kind: input, shape index: {}]
  %s3 = inlined_call_operand.vmem [shape: bf16[512,2], index: 3, kind: input, shape index: {}]
  %s4 = inlined_call_operand.vmem [shape: f32[1,2], index: 4, kind: input, shape index: {}]
  %s5 = inlined_call_operand.vmem [shape: f32[8,2], index: 5, kind: output, shape index: {}]
  %s6 = sld [smem:[#allocation0]]
  $region30: #{tpu_custom_call.1} parent=0
    _
  %s8 = ssub.s32 1, %s6
  %s9 = scalar_select 0, %s8, %s6
  // Predicated region
  $region2: #{tpu_custom_call.1} parent=0 // pred_check
    _
  $region3: #{tpu_custom_call.1} parent=0 // pred_check_branch
    %11 = sbr.rel (0) target = $region5
  $region4: #{tpu_custom_call.1} parent=0 // pred_region
    _
  $region5: #{tpu_custom_call.1} parent=0 // pred_fallthru
    _
  // Predicated region
  $region6: #{tpu_custom_call.1} parent=0 // pred_check
    _
  $region7: #{tpu_custom_call.1} parent=0 // pred_check_branch
    %13 = sbr.rel (0) target = $region9
  $region8: #{tpu_custom_call.1} parent=0 // pred_region
    _
  $region9: #{tpu_custom_call.1} parent=0 // pred_fallthru
    _
  // Predicated region
  $region10: #{tpu_custom_call.1} parent=0 // pred_check
    _
  $region11: #{tpu_custom_call.1} parent=0 // pred_check_branch
    %15 = sbr.rel (0) target = $region13
  $region12: #{tpu_custom_call.1} parent=0 // pred_region
    _
  $region13: #{tpu_custom_call.1} parent=0 // pred_fallthru
    _
  // Predicated region
  $region14: #{tpu_custom_call.1} parent=0 // pred_check
    _
  $region15: #{tpu_custom_call.1} parent=0 // pred_check_branch
    %17 = sbr.rel (0) target = $region17
  $region16: #{tpu_custom_call.1} parent=0 // pred_region
    _
  $region17: #{tpu_custom_call.1} parent=0 // pred_fallthru
    _
  // Predicated region
  $region18: #{tpu_custom_call.1} parent=0 // pred_check
    _
  $region19: #{tpu_custom_call.1} parent=0 // pred_check_branch
    %19 = sbr.rel (0) target = $region21
  $region20: #{tpu_custom_call.1} parent=0 // pred_region
    _
  $region21: #{tpu_custom_call.1} parent=0 // pred_fallthru
    _
  %v21 = vld [vmem:[%s0] sm:$0xff]
  %v22 = vpack.c.bf16 %v21, %v21
  %v23 = vld [vmem:[%s1] sm:$0xff]
  %v24 = vld [vmem:[%s1 + $0x8] sm:$0xff]
  %v25 = vld [vmem:[%s1 + $0x10] sm:$0x77]
  %v26 = vld [vmem:[%s1 + $0x18] sm:$0x77]
  %v27 = vld [vmem:[%s2] sm:$0xf]
  %v29 = vlaneseq
  %v30 = vshrl.u32 %v29, 7
  %v31 = vsub.s32 0, %v30
  %v32 = vrot.slane %v27, %v31
  %v33 = vlaneseq
  %v34 = vshrl.u32 %v33, 7
  %v35 = vsub.s32 1, %v34
  %v36 = vrot.slane %v27, %v35
  %v37 = vlaneseq
  %v38 = vshrl.u32 %v37, 7
  %v39 = vsub.s32 2, %v38
  %v40 = vrot.slane %v27, %v39
  %v41 = vlaneseq
  %v42 = vshrl.u32 %v41, 7
  %v43 = vsub.s32 3, %v42
  %v44 = vrot.slane %v27, %v43
  %v53 = vunpack.c.l.b16 %v23
  %v54 = vunpack.c.h.b16 %v23
  %v55 = vunpack.c.l.b16 %v24
  %v56 = vunpack.c.h.b16 %v24
  %v57 = vunpack.c.l.b16 %v25
  %v58 = vunpack.c.h.b16 %v25
  %v59 = vunpack.c.l.b16 %v26
  %v60 = vunpack.c.h.b16 %v26
  %v61 = vpack.c.b16 %v57, %v53
  %v62 = vpack.c.b16 %v58, %v54
  %v63 = vpack.c.b16 %v59, %v55
  %v64 = vpack.c.b16 %v60, %v56
  %vm65 = vcmask 105472
  %v67 = vsel %vm65, %v22, 0
  %vm69 = vcmask 1045504
  %vm70 = vcmask 1046528
  %v71 = vsel %vm69, 4294967295, 65535
  %v72 = vsel %vm70, %v71, 0
  %v74 = vand.u32 %v61, %v72
  %v77 = vand.u32 %v62, %v72
  %v80 = vand.u32 %v63, %v72
  %v83 = vand.u32 %v64, %v72
  %85 = vmatprep.subr.bf16.mxu0 0
  %86 = vmatpush1.bf16.msra.mxu0 0
  %87 = vmatprep.subr.bf16.mxu0 0
  %88 = vmatpush1.bf16.msra.mxu0 0
  %89 = vmatprep.subr.bf16.mxu0 0
  %90 = vmatpush1.bf16.msra.mxu0 0
  %91 = vmatprep.subr.bf16.mxu0 0
  %92 = vmatpush1.bf16.msra.mxu0 0
  %93 = vmatprep.subr.bf16.mxu0 0
  %94 = vmatpush1.bf16.msra.mxu0 0
  %95 = vmatprep.subr.bf16.mxu0 0
  %96 = vmatpush1.bf16.msra.mxu0 0
  %97 = vmatprep.subr.bf16.mxu0 0
  %98 = vmatpush1.bf16.msra.mxu0 0
  %99 = vmatprep.subr.bf16.mxu0 %v77
  %100 = vmatpush1.bf16.msra.mxu0 %v74
  %101 = vmatprep.subr.bf16.mxu0 0
  %102 = vmatpush2.bf16.msra.mxu0 0
  %103 = vmatprep.subr.bf16.mxu0 0
  %104 = vmatpush2.bf16.msra.mxu0 0
  %105 = vmatprep.subr.bf16.mxu0 0
  %106 = vmatpush2.bf16.msra.mxu0 0
  %107 = vmatprep.subr.bf16.mxu0 0
  %108 = vmatpush2.bf16.msra.mxu0 0
  %109 = vmatprep.subr.bf16.mxu0 0
  %110 = vmatpush2.bf16.msra.mxu0 0
  %111 = vmatprep.subr.bf16.mxu0 0
  %112 = vmatpush2.bf16.msra.mxu0 0
  %113 = vmatprep.subr.bf16.mxu0 0
  %114 = vmatpush2.bf16.msra.mxu0 0
  %115 = vmatprep.subr.bf16.mxu0 0
  %116 = vmatpush2.bf16.msra.mxu0 0
  %117 = vmatprep.mubr.bf16.mxu0 0
  %118 = vmatmul.mubr.bf16.gmra.mxu0 %v67
  %v119 = vpop.f32.mrf.mxu0
  %v120 = vadd.f32 %v32, %v119
  %v121 = vpop.f32.mrf.mxu0
  %v122 = vadd.f32 %v36, %v121
  %v123 = vpop.f32.mrf.mxu0
  %v124 = vpop.f32.mrf.mxu0
  %125 = vdwg.mxu0
  %126 = vmatprep.subr.bf16.mxu0 0
  %127 = vmatpush1.bf16.msra.mxu0 0
  %128 = vmatprep.subr.bf16.mxu0 0
  %129 = vmatpush1.bf16.msra.mxu0 0
  %130 = vmatprep.subr.bf16.mxu0 0
  %131 = vmatpush1.bf16.msra.mxu0 0
  %132 = vmatprep.subr.bf16.mxu0 0
  %133 = vmatpush1.bf16.msra.mxu0 0
  %134 = vmatprep.subr.bf16.mxu0 0
  %135 = vmatpush1.bf16.msra.mxu0 0
  %136 = vmatprep.subr.bf16.mxu0 0
  %137 = vmatpush1.bf16.msra.mxu0 0
  %138 = vmatprep.subr.bf16.mxu0 0
  %139 = vmatpush1.bf16.msra.mxu0 0
  %140 = vmatprep.subr.bf16.mxu0 %v83
  %141 = vmatpush1.bf16.msra.mxu0 %v80
  %142 = vmatprep.subr.bf16.mxu0 0
  %143 = vmatpush2.bf16.msra.mxu0 0
  %144 = vmatprep.subr.bf16.mxu0 0
  %145 = vmatpush2.bf16.msra.mxu0 0
  %146 = vmatprep.subr.bf16.mxu0 0
  %147 = vmatpush2.bf16.msra.mxu0 0
  %148 = vmatprep.subr.bf16.mxu0 0
  %149 = vmatpush2.bf16.msra.mxu0 0
  %150 = vmatprep.subr.bf16.mxu0 0
  %151 = vmatpush2.bf16.msra.mxu0 0
  %152 = vmatprep.subr.bf16.mxu0 0
  %153 = vmatpush2.bf16.msra.mxu0 0
  %154 = vmatprep.subr.bf16.mxu0 0
  %155 = vmatpush2.bf16.msra.mxu0 0
  %156 = vmatprep.subr.bf16.mxu0 0
  %157 = vmatpush2.bf16.msra.mxu0 0
  %158 = vmatprep.mubr.bf16.mxu0 0
  %159 = vmatmul.mubr.bf16.gmra.mxu0 %v67
  %v160 = vpop.f32.mrf.mxu0
  %v161 = vadd.f32 %v40, %v160
  %v162 = vpop.f32.mrf.mxu0
  %v163 = vadd.f32 %v44, %v162
  %v164 = vpop.f32.mrf.mxu0
  %v165 = vpop.f32.mrf.mxu0
  %166 = vdwg.mxu0
  %v167 = vmax.f32 %v120, 0.0
  %v168 = vmax.f32 %v122, 0.0
  %v169 = vmax.f32 %v161, 0.0
  %v170 = vmax.f32 %v163, 0.0
  %v171 = vpack.c.bf16 %v167, %v167
  %v172 = vpack.c.bf16 %v168, %v168
  %v173 = vpack.c.bf16 %v169, %v169
  %v174 = vpack.c.bf16 %v170, %v170
  %v175 = vld [vmem:[%s3] sm:$0xf]
  %v176 = vld [vmem:[%s3 + $0x4] sm:$0xf]
  %v177 = vld [vmem:[%s3 + $0x8] sm:$0xf]
  %v178 = vld [vmem:[%s3 + $0xc] sm:$0xf]
  %v179 = vld [vmem:[%s3 + $0x10] sm:$0xf]
  %v180 = vld [vmem:[%s3 + $0x14] sm:$0xf]
  %v181 = vld [vmem:[%s3 + $0x18] sm:$0xf]
  %v182 = vld [vmem:[%s3 + $0x1c] sm:$0xf]
  %v183 = vld [vmem:[%s3 + $0x20] sm:$0xf]
  %v184 = vld [vmem:[%s3 + $0x24] sm:$0xf]
  %v185 = vld [vmem:[%s3 + $0x28] sm:$0xf]
  %v186 = vld [vmem:[%s3 + $0x2c] sm:$0xf]
  %v187 = vld [vmem:[%s3 + $0x30] sm:$0xf]
  %v188 = vld [vmem:[%s3 + $0x34] sm:$0xf]
  %v189 = vld [vmem:[%s3 + $0x38] sm:$0xf]
  %v190 = vld [vmem:[%s3 + $0x3c] sm:$0xf]
  %v191 = vld [vmem:[%s3 + $0x40] sm:$0xf]
  %v192 = vld [vmem:[%s3 + $0x44] sm:$0xf]
  %v193 = vld [vmem:[%s3 + $0x48] sm:$0xf]
  %v194 = vld [vmem:[%s3 + $0x4c] sm:$0xf]
  %v195 = vld [vmem:[%s3 + $0x50] sm:$0xf]
  %v196 = vld [vmem:[%s3 + $0x54] sm:$0xf]
  %v197 = vld [vmem:[%s3 + $0x58] sm:$0xf]
  %v198 = vld [vmem:[%s3 + $0x5c] sm:$0xf]
  %v199 = vld [vmem:[%s3 + $0x60] sm:$0xf]
  %v200 = vld [vmem:[%s3 + $0x64] sm:$0xf]
  %v201 = vld [vmem:[%s3 + $0x68] sm:$0xf]
  %v202 = vld [vmem:[%s3 + $0x6c] sm:$0xf]
  %v203 = vld [vmem:[%s3 + $0x70] sm:$0xf]
  %v204 = vld [vmem:[%s3 + $0x74] sm:$0xf]
  %v205 = vld [vmem:[%s3 + $0x78] sm:$0xf]
  %v206 = vld [vmem:[%s3 + $0x7c] sm:$0xf]
  %v207 = vld [vmem:[%s3 + $0x80] sm:$0xf]
  %v208 = vld [vmem:[%s3 + $0x84] sm:$0xf]
  %v209 = vld [vmem:[%s3 + $0x88] sm:$0xf]
  %v210 = vld [vmem:[%s3 + $0x8c] sm:$0xf]
  %v211 = vld [vmem:[%s3 + $0x90] sm:$0xf]
  %v212 = vld [vmem:[%s3 + $0x94] sm:$0xf]
  %v213 = vld [vmem:[%s3 + $0x98] sm:$0xf]
  %v214 = vld [vmem:[%s3 + $0x9c] sm:$0xf]
  %v215 = vld [vmem:[%s3 + $0xa0] sm:$0xf]
  %v216 = vld [vmem:[%s3 + $0xa4] sm:$0xf]
  %v217 = vld [vmem:[%s3 + $0xa8] sm:$0xf]
  %v218 = vld [vmem:[%s3 + $0xac] sm:$0xf]
  %v219 = vld [vmem:[%s3 + $0xb0] sm:$0xf]
  %v220 = vld [vmem:[%s3 + $0xb4] sm:$0xf]
  %v221 = vld [vmem:[%s3 + $0xb8] sm:$0xf]
  %v222 = vld [vmem:[%s3 + $0xbc] sm:$0xf]
  %v223 = vld [vmem:[%s3 + $0xc0] sm:$0xf]
  %v224 = vld [vmem:[%s3 + $0xc4] sm:$0xf]
  %v225 = vld [vmem:[%s3 + $0xc8] sm:$0xf]
  %v226 = vld [vmem:[%s3 + $0xcc] sm:$0xf]
  %v227 = vld [vmem:[%s3 + $0xd0] sm:$0xf]
  %v228 = vld [vmem:[%s3 + $0xd4] sm:$0xf]
  %v229 = vld [vmem:[%s3 + $0xd8] sm:$0xf]
  %v230 = vld [vmem:[%s3 + $0xdc] sm:$0xf]
  %v231 = vld [vmem:[%s3 + $0xe0] sm:$0xf]
  %v232 = vld [vmem:[%s3 + $0xe4] sm:$0xf]
  %v233 = vld [vmem:[%s3 + $0xe8] sm:$0xf]
  %v234 = vld [vmem:[%s3 + $0xec] sm:$0xf]
  %v235 = vld [vmem:[%s3 + $0xf0] sm:$0xf]
  %v236 = vld [vmem:[%s3 + $0xf4] sm:$0xf]
  %v237 = vld [vmem:[%s3 + $0xf8] sm:$0xf]
  %v238 = vld [vmem:[%s3 + $0xfc] sm:$0xf]
  %v239 = vld [vmem:[%s4] sm:$0x1]
  %v241 = vlaneseq
  %v242 = vshrl.u32 %v241, 7
  %v243 = vsub.s32 0, %v242
  %v244 = vrot.slane %v239, %v243
  %v310 = vunpack.c.l.b16 %v175
  %v311 = vunpack.c.l.b16 %v176
  %v312 = vunpack.c.l.b16 %v177
  %v313 = vunpack.c.l.b16 %v178
  %v314 = vunpack.c.l.b16 %v179
  %v315 = vunpack.c.l.b16 %v180
  %v316 = vunpack.c.l.b16 %v181
  %v317 = vunpack.c.l.b16 %v182
  %v318 = vunpack.c.l.b16 %v183
  %v319 = vunpack.c.l.b16 %v184
  %v320 = vunpack.c.l.b16 %v185
  %v321 = vunpack.c.l.b16 %v186
  %v322 = vunpack.c.l.b16 %v187
  %v323 = vunpack.c.l.b16 %v188
  %v324 = vunpack.c.l.b16 %v189
  %v325 = vunpack.c.l.b16 %v190
  %v326 = vunpack.c.l.b16 %v191
  %v327 = vunpack.c.l.b16 %v192
  %v328 = vunpack.c.l.b16 %v193
  %v329 = vunpack.c.l.b16 %v194
  %v330 = vunpack.c.l.b16 %v195
  %v331 = vunpack.c.l.b16 %v196
  %v332 = vunpack.c.l.b16 %v197
  %v333 = vunpack.c.l.b16 %v198
  %v334 = vunpack.c.l.b16 %v199
  %v335 = vunpack.c.l.b16 %v200
  %v336 = vunpack.c.l.b16 %v201
  %v337 = vunpack.c.l.b16 %v202
  %v338 = vunpack.c.l.b16 %v203
  %v339 = vunpack.c.l.b16 %v204
  %v340 = vunpack.c.l.b16 %v205
  %v341 = vunpack.c.l.b16 %v206
  %v342 = vunpack.c.l.b16 %v207
  %v343 = vunpack.c.l.b16 %v208
  %v344 = vunpack.c.l.b16 %v209
  %v345 = vunpack.c.l.b16 %v210
  %v346 = vunpack.c.l.b16 %v211
  %v347 = vunpack.c.l.b16 %v212
  %v348 = vunpack.c.l.b16 %v213
  %v349 = vunpack.c.l.b16 %v214
  %v350 = vunpack.c.l.b16 %v215
  %v351 = vunpack.c.l.b16 %v216
  %v352 = vunpack.c.l.b16 %v217
  %v353 = vunpack.c.l.b16 %v218
  %v354 = vunpack.c.l.b16 %v219
  %v355 = vunpack.c.l.b16 %v220
  %v356 = vunpack.c.l.b16 %v221
  %v357 = vunpack.c.l.b16 %v222
  %v358 = vunpack.c.l.b16 %v223
  %v359 = vunpack.c.l.b16 %v224
  %v360 = vunpack.c.l.b16 %v225
  %v361 = vunpack.c.l.b16 %v226
  %v362 = vunpack.c.l.b16 %v227
  %v363 = vunpack.c.l.b16 %v228
  %v364 = vunpack.c.l.b16 %v229
  %v365 = vunpack.c.l.b16 %v230
  %v366 = vunpack.c.l.b16 %v231
  %v367 = vunpack.c.l.b16 %v232
  %v368 = vunpack.c.l.b16 %v233
  %v369 = vunpack.c.l.b16 %v234
  %v370 = vunpack.c.l.b16 %v235
  %v371 = vunpack.c.l.b16 %v236
  %v372 = vunpack.c.l.b16 %v237
  %v373 = vunpack.c.l.b16 %v238
  %v374 = vpack.c.b16 %v311, %v310
  %v375 = vpack.c.b16 %v313, %v312
  %v376 = vpack.c.b16 %v315, %v314
  %v377 = vpack.c.b16 %v317, %v316
  %v378 = vpack.c.b16 %v319, %v318
  %v379 = vpack.c.b16 %v321, %v320
  %v380 = vpack.c.b16 %v323, %v322
  %v381 = vpack.c.b16 %v325, %v324
  %v382 = vpack.c.b16 %v327, %v326
  %v383 = vpack.c.b16 %v329, %v328
  %v384 = vpack.c.b16 %v331, %v330
  %v385 = vpack.c.b16 %v333, %v332
  %v386 = vpack.c.b16 %v335, %v334
  %v387 = vpack.c.b16 %v337, %v336
  %v388 = vpack.c.b16 %v339, %v338
  %v389 = vpack.c.b16 %v341, %v340
  %v390 = vpack.c.b16 %v343, %v342
  %v391 = vpack.c.b16 %v345, %v344
  %v392 = vpack.c.b16 %v347, %v346
  %v393 = vpack.c.b16 %v349, %v348
  %v394 = vpack.c.b16 %v351, %v350
  %v395 = vpack.c.b16 %v353, %v352
  %v396 = vpack.c.b16 %v355, %v354
  %v397 = vpack.c.b16 %v357, %v356
  %v398 = vpack.c.b16 %v359, %v358
  %v399 = vpack.c.b16 %v361, %v360
  %v400 = vpack.c.b16 %v363, %v362
  %v401 = vpack.c.b16 %v365, %v364
  %v402 = vpack.c.b16 %v367, %v366
  %v403 = vpack.c.b16 %v369, %v368
  %v404 = vpack.c.b16 %v371, %v370
  %v405 = vpack.c.b16 %v373, %v372
  %438 = vmatprep.subr.bf16.mxu0 0
  %439 = vmatpush1.bf16.msra.mxu0 %v381
  %440 = vmatprep.subr.bf16.mxu0 0
  %441 = vmatpush1.bf16.msra.mxu0 %v380
  %442 = vmatprep.subr.bf16.mxu0 0
  %443 = vmatpush1.bf16.msra.mxu0 %v379
  %444 = vmatprep.subr.bf16.mxu0 0
  %445 = vmatpush1.bf16.msra.mxu0 %v378
  %446 = vmatprep.subr.bf16.mxu0 0
  %447 = vmatpush1.bf16.msra.mxu0 %v377
  %448 = vmatprep.subr.bf16.mxu0 0
  %449 = vmatpush1.bf16.msra.mxu0 %v376
  %450 = vmatprep.subr.bf16.mxu0 0
  %451 = vmatpush1.bf16.msra.mxu0 %v375
  %452 = vmatprep.subr.bf16.mxu0 0
  %453 = vmatpush1.bf16.msra.mxu0 %v374
  %454 = vmatprep.subr.bf16.mxu0 0
  %455 = vmatpush2.bf16.msra.mxu0 %v389
  %456 = vmatprep.subr.bf16.mxu0 0
  %457 = vmatpush2.bf16.msra.mxu0 %v388
  %458 = vmatprep.subr.bf16.mxu0 0
  %459 = vmatpush2.bf16.msra.mxu0 %v387
  %460 = vmatprep.subr.bf16.mxu0 0
  %461 = vmatpush2.bf16.msra.mxu0 %v386
  %462 = vmatprep.subr.bf16.mxu0 0
  %463 = vmatpush2.bf16.msra.mxu0 %v385
  %464 = vmatprep.subr.bf16.mxu0 0
  %465 = vmatpush2.bf16.msra.mxu0 %v384
  %466 = vmatprep.subr.bf16.mxu0 0
  %467 = vmatpush2.bf16.msra.mxu0 %v383
  %468 = vmatprep.subr.bf16.mxu0 0
  %469 = vmatpush2.bf16.msra.mxu0 %v382
  %470 = vmatprep.mubr.bf16.mxu0 %v172
  %471 = vmatmul.mubr.bf16.gmra.mxu0 %v171
  %v472 = vpop.f32.mrf.mxu0
  %v473 = vadd.f32 %v244, %v472
  %v474 = vpop.f32.mrf.mxu0
  %v475 = vpop.f32.mrf.mxu0
  %v476 = vpop.f32.mrf.mxu0
  %477 = vdwg.mxu0
  %478 = vmatprep.subr.bf16.mxu0 0
  %479 = vmatpush1.bf16.msra.mxu0 %v397
  %480 = vmatprep.subr.bf16.mxu0 0
  %481 = vmatpush1.bf16.msra.mxu0 %v396
  %482 = vmatprep.subr.bf16.mxu0 0
  %483 = vmatpush1.bf16.msra.mxu0 %v395
  %484 = vmatprep.subr.bf16.mxu0 0
  %485 = vmatpush1.bf16.msra.mxu0 %v394
  %486 = vmatprep.subr.bf16.mxu0 0
  %487 = vmatpush1.bf16.msra.mxu0 %v393
  %488 = vmatprep.subr.bf16.mxu0 0
  %489 = vmatpush1.bf16.msra.mxu0 %v392
  %490 = vmatprep.subr.bf16.mxu0 0
  %491 = vmatpush1.bf16.msra.mxu0 %v391
  %492 = vmatprep.subr.bf16.mxu0 0
  %493 = vmatpush1.bf16.msra.mxu0 %v390
  %494 = vmatprep.subr.bf16.mxu0 0
  %495 = vmatpush2.bf16.msra.mxu0 %v405
  %496 = vmatprep.subr.bf16.mxu0 0
  %497 = vmatpush2.bf16.msra.mxu0 %v404
  %498 = vmatprep.subr.bf16.mxu0 0
  %499 = vmatpush2.bf16.msra.mxu0 %v403
  %500 = vmatprep.subr.bf16.mxu0 0
  %501 = vmatpush2.bf16.msra.mxu0 %v402
  %502 = vmatprep.subr.bf16.mxu0 0
  %503 = vmatpush2.bf16.msra.mxu0 %v401
  %504 = vmatprep.subr.bf16.mxu0 0
  %505 = vmatpush2.bf16.msra.mxu0 %v400
  %506 = vmatprep.subr.bf16.mxu0 0
  %507 = vmatpush2.bf16.msra.mxu0 %v399
  %508 = vmatprep.subr.bf16.mxu0 0
  %509 = vmatpush2.bf16.msra.mxu0 %v398
  %510 = vmatprep.mubr.bf16.mxu0 %v174
  %511 = vmatmul.mubr.bf16.gmra.mxu0 %v173
  %v512 = vpop.f32.mrf.mxu0
  %v513 = vadd.f32 %v473, %v512
  %v514 = vpop.f32.mrf.mxu0
  %v515 = vpop.f32.mrf.mxu0
  %v516 = vpop.f32.mrf.mxu0
  %517 = vdwg.mxu0
  %vm518 = vcmask 15360
  %519 = vst.msk [vmem:[%s5] sm:$0xff] %vm518, %v513
  // Predicated region
  $region22: #{tpu_custom_call.1} parent=0 // pred_check
    _
  $region23: #{tpu_custom_call.1} parent=0 // pred_check_branch
    %521 = sbr.rel (0) target = $region25
  $region24: #{tpu_custom_call.1} parent=0 // pred_region
    _
  $region25: #{tpu_custom_call.1} parent=0 // pred_fallthru
    _
  // Predicated region
  $region26: #{tpu_custom_call.1} parent=0 // pred_check
    _
  $region27: #{tpu_custom_call.1} parent=0 // pred_check_branch
    %523 = sbr.rel (0) target = $region29
  $region28: #{tpu_custom_call.1} parent=0 // pred_region
    _
  $region29: #{tpu_custom_call.1} parent=0 // pred_fallthru
    _

</llo_original>
